<compile_context>
chip_gen: v7x
topology: tpu7x:2x2x1
jax: 0.10.0
libtpu: 0.0.40
codegen_flags: <defaults>
</compile_context>

<pallas_src>
import functools

import jax
import jax.numpy as jnp
from jax.experimental import pallas as pl
from jax.experimental.pallas import tpu as pltpu

HIDDEN = 20
_N_PARTIAL = 4  # independent accumulator chains to hide VALU latency


def _cd_scalar(v, dtype):
    # Cast an SMEM-loaded f32 scalar to the compute dtype as a (1,1) vector so
    # the convert lowers as a plain vector op and broadcasting is a cheap splat.
    return v.reshape(1, 1).astype(dtype)


def mlp_kernel(p_ref, x_ref, o_ref, *, compute_dtype):
    """One lane-dense batch tile of  y = b2 + sum_k w2[k]*relu(w1[k]*x + b1[k]).

    p_ref : (4, HIDDEN) f32 in SMEM (scalar prefetch, resident across the grid)
            row 0 = w1, row 1 = b1, row 2 = w2, [3, 0] = b2.
    x_ref / o_ref : (sublanes, lanes) f32 VMEM tiles; every element is an
            independent batch sample (batch laid out lane-dense).
    """
    assert HIDDEN >= _N_PARTIAL
    x = x_ref[...].astype(compute_dtype)  # cast once; per-unit math in compute_dtype

    # HIDDEN unrolled scalar*vector FMA/ReLU units split across _N_PARTIAL
    # accumulator chains (keeps the VALU slots busy instead of stalling on one
    # 20-deep dependent add chain).
    partial = [None] * _N_PARTIAL
    for k in range(HIDDEN):
        w1k = _cd_scalar(p_ref[0, k], compute_dtype)
        b1k = _cd_scalar(p_ref[1, k], compute_dtype)
        w2k = _cd_scalar(p_ref[2, k], compute_dtype)
        h = jnp.maximum(x * w1k + b1k, 0.0)  # ReLU(Linear(1->20)) unit k
        term = h * w2k                       # Linear(20->1) contribution of unit k
        a = k % _N_PARTIAL
        partial[a] = term if partial[a] is None else partial[a] + term

    # Final reduction tree + output bias in f32 (keeps bf16 accumulation shallow).
    p0 = partial[0].astype(jnp.float32)
    p1 = partial[1].astype(jnp.float32)
    p2 = partial[2].astype(jnp.float32)
    p3 = partial[3].astype(jnp.float32)
    total = (p0 + p1) + (p2 + p3)
    o_ref[...] = (total + p_ref[3, 0]).astype(o_ref.dtype)


def _pack_params(w1, b1, w2, b2):
    """Pack all parameters into one (4, HIDDEN) f32 array (single tiny DMA).

    Expects (in, out)-convention weights: w1 is Linear(1 -> HIDDEN), w2 is
    Linear(HIDDEN -> 1).  Because one dim of each weight is 1, a transposed
    convention ravels to the same flat vector, but the shapes are checked.
    """
    w1 = jnp.asarray(w1, jnp.float32).reshape(-1)
    b1 = jnp.asarray(b1, jnp.float32).reshape(-1)
    w2 = jnp.asarray(w2, jnp.float32).reshape(-1)
    b2 = jnp.asarray(b2, jnp.float32).reshape(-1)
    assert w1.shape == (HIDDEN,), "w1 must hold HIDDEN scalars (Linear(1, HIDDEN))"
    assert b1.shape == (HIDDEN,), "b1 must hold HIDDEN scalars"
    assert w2.shape == (HIDDEN,), "w2 must hold HIDDEN scalars (Linear(HIDDEN, 1))"
    assert b2.shape == (1,), "b2 must hold a single scalar"
    p = jnp.zeros((4, HIDDEN), jnp.float32)
    p = p.at[0, :].set(w1)
    p = p.at[1, :].set(b1)
    p = p.at[2, :].set(w2)
    p = p.at[3, 0].set(b2[0])
    return p


def _device_kind():
    try:
        return jax.devices()[0].device_kind.lower()
    except Exception:
        return ""


def _default_compute_dtype():
    kind = _device_kind()
    # v6e / v7x VPUs have packed bf16 (~2x throughput on the binding VALU slot);
    # v5e and older do not, so they stay in f32.
    if any(tag in kind for tag in ("v6", "v7", "tpu7", "trillium")):
        return jnp.bfloat16
    return jnp.float32


def _batch_dim_semantics(n_blocks):
    kind = _device_kind()
    # v7x has 2 TensorCores per chip; CORE_PARALLEL actually shards the batch
    # grid axis across them (plain "parallel" has near-zero measured effect).
    if n_blocks >= 2 and any(tag in kind for tag in ("v7", "tpu7", "7x")):
        return (pltpu.CORE_PARALLEL,)
    return ("parallel",)


def net_forward(x, w1, b1, w2, b2, *, block_lanes=1024, max_block_sublanes=128,
                compute_dtype=None):
    """x: (N, 1) f32 -> (N, 1) f32 of Linear(1->20) + ReLU + Linear(20->1)."""
    if compute_dtype is None:
        compute_dtype = _default_compute_dtype()

    N = x.shape[0]
    lanes = max(128, (block_lanes // 128) * 128)
    max_sub = max(8, (max_block_sublanes // 8) * 8)

    rows_needed = pl.cdiv(N, lanes)
    rows_min = max(8, pl.cdiv(rows_needed, 8) * 8)     # sublane granularity
    block_sublanes = min(max_sub, rows_min)            # small N -> small tile
    n_blocks = pl.cdiv(rows_min, block_sublanes)
    rows_pad = n_blocks * block_sublanes
    n_pad = rows_pad * lanes

    xf = jnp.ravel(x).astype(jnp.float32)              # free view of (N, 1)
    if n_pad != N:
        xf = jnp.pad(xf, (0, n_pad - N))               # only copy when the tail is ragged
    x2d = xf.reshape(rows_pad, lanes)                  # lane-dense layout

    params = _pack_params(w1, b1, w2, b2)

    grid_spec = pltpu.PrefetchScalarGridSpec(
        num_scalar_prefetch=1,                         # params -> SMEM, resident across grid
        grid=(n_blocks,),
        in_specs=[pl.BlockSpec((block_sublanes, lanes), lambda i, p: (i, 0))],
        out_specs=pl.BlockSpec((block_sublanes, lanes), lambda i, p: (i, 0)),
    )

    out2d = pl.pallas_call(
        functools.partial(mlp_kernel, compute_dtype=compute_dtype),
        out_shape=jax.ShapeDtypeStruct((rows_pad, lanes), jnp.float32),
        grid_spec=grid_spec,
        compiler_params=pltpu.CompilerParams(
            dimension_semantics=_batch_dim_semantics(n_blocks),
        ),
    )(params, x2d)

    out = out2d.reshape(-1)
    if n_pad != N:
        out = out[:N]                                  # drop garbage padding lanes
    return out.reshape(N, 1)


def init_params(key):
    """Deterministic init mimicking torch.nn.Linear default (uniform +-1/sqrt(fan_in))."""
    k1, k2, k3, k4 = jax.random.split(key, 4)
    bound1 = 1.0 / jnp.sqrt(1.0)    # fan_in = 1
    bound2 = 1.0 / jnp.sqrt(20.0)   # fan_in = 20
    w1 = jax.random.uniform(k1, (1, HIDDEN), jnp.float32, -bound1, bound1)   # (in, out)
    b1 = jax.random.uniform(k2, (1, HIDDEN), jnp.float32, -bound1, bound1)
    w2 = jax.random.uniform(k3, (HIDDEN, 1), jnp.float32, -bound2, bound2)   # (in, out)
    b2 = jax.random.uniform(k4, (1, 1), jnp.float32, -bound2, bound2)
    return w1, b1, w2, b2


def reference_forward(x, w1, b1, w2, b2):
    h = jnp.maximum(x @ w1 + b1, 0.0)
    return h @ w2 + b2


if __name__ == "__main__":
    key = jax.random.PRNGKey(0)
    w1, b1, w2, b2 = init_params(key)

    # Tolerance depends on the auto-selected compute dtype: bf16 VPU math on
    # v6e/v7x trades ~1e-2 absolute error for ~2x throughput on the bound slot.
    cd = _default_compute_dtype()
    tol = (dict(atol=1e-5, rtol=1e-4) if cd == jnp.float32
           else dict(atol=1e-1, rtol=1e-1))

    fwd = jax.jit(net_forward,
                  static_argnames=("block_lanes", "max_block_sublanes", "compute_dtype"))

    # Case 1: spec-faithful input (torch.unsqueeze(torch.linspace(-1, 1, 1000), 1)).
    x1 = jnp.linspace(-1.0, 1.0, 1000, dtype=jnp.float32).reshape(-1, 1)
    out1 = jax.block_until_ready(fwd(x1, w1, b1, w2, b2))
    ref1 = reference_forward(x1, w1, b1, w2, b2)
    assert out1.shape == (1000, 1)
    assert jnp.allclose(out1, ref1, **tol)

    # Case 2: force small tiles so the multi-block grid + ragged-tail path runs.
    x2 = jax.random.uniform(jax.random.PRNGKey(1), (20000, 1), jnp.float32, -1.0, 1.0)
    out2 = jax.block_until_ready(
        fwd(x2, w1, b1, w2, b2, block_lanes=256, max_block_sublanes=16))
    ref2 = reference_forward(x2, w1, b1, w2, b2)
    assert out2.shape == (20000, 1)
    assert jnp.allclose(out2, ref2, **tol)

    print("KERNEL_OK")
</pallas_src>

<mosaic_0001>
module attributes {stable_mosaic.version = 11 : i64} {
  func.func @mlp_kernel(%arg0: i32, %arg1: memref<4x20xf32, #tpu.memory_space<smem>>, %arg2: memref<8x1024xf32, #tpu.memory_space<vmem>>, %arg3: memref<8x1024xf32, #tpu.memory_space<vmem>>) attributes {dimension_semantics = [#tpu.dimension_semantics<parallel>], iteration_bounds = array<i64: 1>, scalar_prefetch = 1 : i64, scratch_operands = 0 : i64, tpu.core_type = #tpu.core_type<tc>, window_params = [{transform_indices = @transform_0, window_bounds = array<i64: 8, 1024>}, {transform_indices = @transform_1, window_bounds = array<i64: 8, 1024>}]} {
    %c0 = arith.constant 0 : index
    %c0_0 = arith.constant 0 : index
    %0 = vector.load %arg2[%c0, %c0_0] : memref<8x1024xf32, #tpu.memory_space<vmem>>, vector<8x1024xf32>
    %c0_1 = arith.constant 0 : index
    %c0_2 = arith.constant 0 : index
    %1 = memref.load %arg1[%c0_1, %c0_2] : memref<4x20xf32, #tpu.memory_space<smem>>
    %2 = vector.broadcast %1 : f32 to vector<1x1xf32>
    %c1 = arith.constant 1 : index
    %c0_3 = arith.constant 0 : index
    %3 = memref.load %arg1[%c1, %c0_3] : memref<4x20xf32, #tpu.memory_space<smem>>
    %4 = vector.broadcast %3 : f32 to vector<1x1xf32>
    %c2 = arith.constant 2 : index
    %c0_4 = arith.constant 0 : index
    %5 = memref.load %arg1[%c2, %c0_4] : memref<4x20xf32, #tpu.memory_space<smem>>
    %6 = vector.broadcast %5 : f32 to vector<1x1xf32>
    %7 = vector.broadcast %2 : vector<1x1xf32> to vector<8x1024xf32>
    %8 = arith.mulf %0, %7 : vector<8x1024xf32>
    %9 = vector.broadcast %4 : vector<1x1xf32> to vector<8x1024xf32>
    %10 = arith.addf %8, %9 : vector<8x1024xf32>
    %cst = arith.constant 0.000000e+00 : f32
    %11 = vector.broadcast %cst : f32 to vector<8x1024xf32>
    %12 = arith.maximumf %10, %11 : vector<8x1024xf32>
    %13 = vector.broadcast %6 : vector<1x1xf32> to vector<8x1024xf32>
    %14 = arith.mulf %12, %13 : vector<8x1024xf32>
    %c0_5 = arith.constant 0 : index
    %c1_6 = arith.constant 1 : index
    %15 = memref.load %arg1[%c0_5, %c1_6] : memref<4x20xf32, #tpu.memory_space<smem>>
    %16 = vector.broadcast %15 : f32 to vector<1x1xf32>
    %c1_7 = arith.constant 1 : index
    %c1_8 = arith.constant 1 : index
    %17 = memref.load %arg1[%c1_7, %c1_8] : memref<4x20xf32, #tpu.memory_space<smem>>
    %18 = vector.broadcast %17 : f32 to vector<1x1xf32>
    %c2_9 = arith.constant 2 : index
    %c1_10 = arith.constant 1 : index
    %19 = memref.load %arg1[%c2_9, %c1_10] : memref<4x20xf32, #tpu.memory_space<smem>>
    %20 = vector.broadcast %19 : f32 to vector<1x1xf32>
    %21 = vector.broadcast %16 : vector<1x1xf32> to vector<8x1024xf32>
    %22 = arith.mulf %0, %21 : vector<8x1024xf32>
    %23 = vector.broadcast %18 : vector<1x1xf32> to vector<8x1024xf32>
    %24 = arith.addf %22, %23 : vector<8x1024xf32>
    %cst_11 = arith.constant 0.000000e+00 : f32
    %25 = vector.broadcast %cst_11 : f32 to vector<8x1024xf32>
    %26 = arith.maximumf %24, %25 : vector<8x1024xf32>
    %27 = vector.broadcast %20 : vector<1x1xf32> to vector<8x1024xf32>
    %28 = arith.mulf %26, %27 : vector<8x1024xf32>
    %c0_12 = arith.constant 0 : index
    %c2_13 = arith.constant 2 : index
    %29 = memref.load %arg1[%c0_12, %c2_13] : memref<4x20xf32, #tpu.memory_space<smem>>
    %30 = vector.broadcast %29 : f32 to vector<1x1xf32>
    %c1_14 = arith.constant 1 : index
    %c2_15 = arith.constant 2 : index
    %31 = memref.load %arg1[%c1_14, %c2_15] : memref<4x20xf32, #tpu.memory_space<smem>>
    %32 = vector.broadcast %31 : f32 to vector<1x1xf32>
    %c2_16 = arith.constant 2 : index
    %c2_17 = arith.constant 2 : index
    %33 = memref.load %arg1[%c2_16, %c2_17] : memref<4x20xf32, #tpu.memory_space<smem>>
    %34 = vector.broadcast %33 : f32 to vector<1x1xf32>
    %35 = vector.broadcast %30 : vector<1x1xf32> to vector<8x1024xf32>
    %36 = arith.mulf %0, %35 : vector<8x1024xf32>
    %37 = vector.broadcast %32 : vector<1x1xf32> to vector<8x1024xf32>
    %38 = arith.addf %36, %37 : vector<8x1024xf32>
    %cst_18 = arith.constant 0.000000e+00 : f32
    %39 = vector.broadcast %cst_18 : f32 to vector<8x1024xf32>
    %40 = arith.maximumf %38, %39 : vector<8x1024xf32>
    %41 = vector.broadcast %34 : vector<1x1xf32> to vector<8x1024xf32>
    %42 = arith.mulf %40, %41 : vector<8x1024xf32>
    %c0_19 = arith.constant 0 : index
    %c3 = arith.constant 3 : index
    %43 = memref.load %arg1[%c0_19, %c3] : memref<4x20xf32, #tpu.memory_space<smem>>
    %44 = vector.broadcast %43 : f32 to vector<1x1xf32>
    %c1_20 = arith.constant 1 : index
    %c3_21 = arith.constant 3 : index
    %45 = memref.load %arg1[%c1_20, %c3_21] : memref<4x20xf32, #tpu.memory_space<smem>>
    %46 = vector.broadcast %45 : f32 to vector<1x1xf32>
    %c2_22 = arith.constant 2 : index
    %c3_23 = arith.constant 3 : index
    %47 = memref.load %arg1[%c2_22, %c3_23] : memref<4x20xf32, #tpu.memory_space<smem>>
    %48 = vector.broadcast %47 : f32 to vector<1x1xf32>
    %49 = vector.broadcast %44 : vector<1x1xf32> to vector<8x1024xf32>
    %50 = arith.mulf %0, %49 : vector<8x1024xf32>
    %51 = vector.broadcast %46 : vector<1x1xf32> to vector<8x1024xf32>
    %52 = arith.addf %50, %51 : vector<8x1024xf32>
    %cst_24 = arith.constant 0.000000e+00 : f32
    %53 = vector.broadcast %cst_24 : f32 to vector<8x1024xf32>
    %54 = arith.maximumf %52, %53 : vector<8x1024xf32>
    %55 = vector.broadcast %48 : vector<1x1xf32> to vector<8x1024xf32>
    %56 = arith.mulf %54, %55 : vector<8x1024xf32>
    %c0_25 = arith.constant 0 : index
    %c4 = arith.constant 4 : index
    %57 = memref.load %arg1[%c0_25, %c4] : memref<4x20xf32, #tpu.memory_space<smem>>
    %58 = vector.broadcast %57 : f32 to vector<1x1xf32>
    %c1_26 = arith.constant 1 : index
    %c4_27 = arith.constant 4 : index
    %59 = memref.load %arg1[%c1_26, %c4_27] : memref<4x20xf32, #tpu.memory_space<smem>>
    %60 = vector.broadcast %59 : f32 to vector<1x1xf32>
    %c2_28 = arith.constant 2 : index
    %c4_29 = arith.constant 4 : index
    %61 = memref.load %arg1[%c2_28, %c4_29] : memref<4x20xf32, #tpu.memory_space<smem>>
    %62 = vector.broadcast %61 : f32 to vector<1x1xf32>
    %63 = vector.broadcast %58 : vector<1x1xf32> to vector<8x1024xf32>
    %64 = arith.mulf %0, %63 : vector<8x1024xf32>
    %65 = vector.broadcast %60 : vector<1x1xf32> to vector<8x1024xf32>
    %66 = arith.addf %64, %65 : vector<8x1024xf32>
    %cst_30 = arith.constant 0.000000e+00 : f32
    %67 = vector.broadcast %cst_30 : f32 to vector<8x1024xf32>
    %68 = arith.maximumf %66, %67 : vector<8x1024xf32>
    %69 = vector.broadcast %62 : vector<1x1xf32> to vector<8x1024xf32>
    %70 = arith.mulf %68, %69 : vector<8x1024xf32>
    %71 = arith.addf %14, %70 : vector<8x1024xf32>
    %c0_31 = arith.constant 0 : index
    %c5 = arith.constant 5 : index
    %72 = memref.load %arg1[%c0_31, %c5] : memref<4x20xf32, #tpu.memory_space<smem>>
    %73 = vector.broadcast %72 : f32 to vector<1x1xf32>
    %c1_32 = arith.constant 1 : index
    %c5_33 = arith.constant 5 : index
    %74 = memref.load %arg1[%c1_32, %c5_33] : memref<4x20xf32, #tpu.memory_space<smem>>
    %75 = vector.broadcast %74 : f32 to vector<1x1xf32>
    %c2_34 = arith.constant 2 : index
    %c5_35 = arith.constant 5 : index
    %76 = memref.load %arg1[%c2_34, %c5_35] : memref<4x20xf32, #tpu.memory_space<smem>>
    %77 = vector.broadcast %76 : f32 to vector<1x1xf32>
    %78 = vector.broadcast %73 : vector<1x1xf32> to vector<8x1024xf32>
    %79 = arith.mulf %0, %78 : vector<8x1024xf32>
    %80 = vector.broadcast %75 : vector<1x1xf32> to vector<8x1024xf32>
    %81 = arith.addf %79, %80 : vector<8x1024xf32>
    %cst_36 = arith.constant 0.000000e+00 : f32
    %82 = vector.broadcast %cst_36 : f32 to vector<8x1024xf32>
    %83 = arith.maximumf %81, %82 : vector<8x1024xf32>
    %84 = vector.broadcast %77 : vector<1x1xf32> to vector<8x1024xf32>
    %85 = arith.mulf %83, %84 : vector<8x1024xf32>
    %86 = arith.addf %28, %85 : vector<8x1024xf32>
    %c0_37 = arith.constant 0 : index
    %c6 = arith.constant 6 : index
    %87 = memref.load %arg1[%c0_37, %c6] : memref<4x20xf32, #tpu.memory_space<smem>>
    %88 = vector.broadcast %87 : f32 to vector<1x1xf32>
    %c1_38 = arith.constant 1 : index
    %c6_39 = arith.constant 6 : index
    %89 = memref.load %arg1[%c1_38, %c6_39] : memref<4x20xf32, #tpu.memory_space<smem>>
    %90 = vector.broadcast %89 : f32 to vector<1x1xf32>
    %c2_40 = arith.constant 2 : index
    %c6_41 = arith.constant 6 : index
    %91 = memref.load %arg1[%c2_40, %c6_41] : memref<4x20xf32, #tpu.memory_space<smem>>
    %92 = vector.broadcast %91 : f32 to vector<1x1xf32>
    %93 = vector.broadcast %88 : vector<1x1xf32> to vector<8x1024xf32>
    %94 = arith.mulf %0, %93 : vector<8x1024xf32>
    %95 = vector.broadcast %90 : vector<1x1xf32> to vector<8x1024xf32>
    %96 = arith.addf %94, %95 : vector<8x1024xf32>
    %cst_42 = arith.constant 0.000000e+00 : f32
    %97 = vector.broadcast %cst_42 : f32 to vector<8x1024xf32>
    %98 = arith.maximumf %96, %97 : vector<8x1024xf32>
    %99 = vector.broadcast %92 : vector<1x1xf32> to vector<8x1024xf32>
    %100 = arith.mulf %98, %99 : vector<8x1024xf32>
    %101 = arith.addf %42, %100 : vector<8x1024xf32>
    %c0_43 = arith.constant 0 : index
    %c7 = arith.constant 7 : index
    %102 = memref.load %arg1[%c0_43, %c7] : memref<4x20xf32, #tpu.memory_space<smem>>
    %103 = vector.broadcast %102 : f32 to vector<1x1xf32>
    %c1_44 = arith.constant 1 : index
    %c7_45 = arith.constant 7 : index
    %104 = memref.load %arg1[%c1_44, %c7_45] : memref<4x20xf32, #tpu.memory_space<smem>>
    %105 = vector.broadcast %104 : f32 to vector<1x1xf32>
    %c2_46 = arith.constant 2 : index
    %c7_47 = arith.constant 7 : index
    %106 = memref.load %arg1[%c2_46, %c7_47] : memref<4x20xf32, #tpu.memory_space<smem>>
    %107 = vector.broadcast %106 : f32 to vector<1x1xf32>
    %108 = vector.broadcast %103 : vector<1x1xf32> to vector<8x1024xf32>
    %109 = arith.mulf %0, %108 : vector<8x1024xf32>
    %110 = vector.broadcast %105 : vector<1x1xf32> to vector<8x1024xf32>
    %111 = arith.addf %109, %110 : vector<8x1024xf32>
    %cst_48 = arith.constant 0.000000e+00 : f32
    %112 = vector.broadcast %cst_48 : f32 to vector<8x1024xf32>
    %113 = arith.maximumf %111, %112 : vector<8x1024xf32>
    %114 = vector.broadcast %107 : vector<1x1xf32> to vector<8x1024xf32>
    %115 = arith.mulf %113, %114 : vector<8x1024xf32>
    %116 = arith.addf %56, %115 : vector<8x1024xf32>
    %c0_49 = arith.constant 0 : index
    %c8 = arith.constant 8 : index
    %117 = memref.load %arg1[%c0_49, %c8] : memref<4x20xf32, #tpu.memory_space<smem>>
    %118 = vector.broadcast %117 : f32 to vector<1x1xf32>
    %c1_50 = arith.constant 1 : index
    %c8_51 = arith.constant 8 : index
    %119 = memref.load %arg1[%c1_50, %c8_51] : memref<4x20xf32, #tpu.memory_space<smem>>
    %120 = vector.broadcast %119 : f32 to vector<1x1xf32>
    %c2_52 = arith.constant 2 : index
    %c8_53 = arith.constant 8 : index
    %121 = memref.load %arg1[%c2_52, %c8_53] : memref<4x20xf32, #tpu.memory_space<smem>>
    %122 = vector.broadcast %121 : f32 to vector<1x1xf32>
    %123 = vector.broadcast %118 : vector<1x1xf32> to vector<8x1024xf32>
    %124 = arith.mulf %0, %123 : vector<8x1024xf32>
    %125 = vector.broadcast %120 : vector<1x1xf32> to vector<8x1024xf32>
    %126 = arith.addf %124, %125 : vector<8x1024xf32>
    %cst_54 = arith.constant 0.000000e+00 : f32
    %127 = vector.broadcast %cst_54 : f32 to vector<8x1024xf32>
    %128 = arith.maximumf %126, %127 : vector<8x1024xf32>
    %129 = vector.broadcast %122 : vector<1x1xf32> to vector<8x1024xf32>
    %130 = arith.mulf %128, %129 : vector<8x1024xf32>
    %131 = arith.addf %71, %130 : vector<8x1024xf32>
    %c0_55 = arith.constant 0 : index
    %c9 = arith.constant 9 : index
    %132 = memref.load %arg1[%c0_55, %c9] : memref<4x20xf32, #tpu.memory_space<smem>>
    %133 = vector.broadcast %132 : f32 to vector<1x1xf32>
    %c1_56 = arith.constant 1 : index
    %c9_57 = arith.constant 9 : index
    %134 = memref.load %arg1[%c1_56, %c9_57] : memref<4x20xf32, #tpu.memory_space<smem>>
    %135 = vector.broadcast %134 : f32 to vector<1x1xf32>
    %c2_58 = arith.constant 2 : index
    %c9_59 = arith.constant 9 : index
    %136 = memref.load %arg1[%c2_58, %c9_59] : memref<4x20xf32, #tpu.memory_space<smem>>
    %137 = vector.broadcast %136 : f32 to vector<1x1xf32>
    %138 = vector.broadcast %133 : vector<1x1xf32> to vector<8x1024xf32>
    %139 = arith.mulf %0, %138 : vector<8x1024xf32>
    %140 = vector.broadcast %135 : vector<1x1xf32> to vector<8x1024xf32>
    %141 = arith.addf %139, %140 : vector<8x1024xf32>
    %cst_60 = arith.constant 0.000000e+00 : f32
    %142 = vector.broadcast %cst_60 : f32 to vector<8x1024xf32>
    %143 = arith.maximumf %141, %142 : vector<8x1024xf32>
    %144 = vector.broadcast %137 : vector<1x1xf32> to vector<8x1024xf32>
    %145 = arith.mulf %143, %144 : vector<8x1024xf32>
    %146 = arith.addf %86, %145 : vector<8x1024xf32>
    %c0_61 = arith.constant 0 : index
    %c10 = arith.constant 10 : index
    %147 = memref.load %arg1[%c0_61, %c10] : memref<4x20xf32, #tpu.memory_space<smem>>
    %148 = vector.broadcast %147 : f32 to vector<1x1xf32>
    %c1_62 = arith.constant 1 : index
    %c10_63 = arith.constant 10 : index
    %149 = memref.load %arg1[%c1_62, %c10_63] : memref<4x20xf32, #tpu.memory_space<smem>>
    %150 = vector.broadcast %149 : f32 to vector<1x1xf32>
    %c2_64 = arith.constant 2 : index
    %c10_65 = arith.constant 10 : index
    %151 = memref.load %arg1[%c2_64, %c10_65] : memref<4x20xf32, #tpu.memory_space<smem>>
    %152 = vector.broadcast %151 : f32 to vector<1x1xf32>
    %153 = vector.broadcast %148 : vector<1x1xf32> to vector<8x1024xf32>
    %154 = arith.mulf %0, %153 : vector<8x1024xf32>
    %155 = vector.broadcast %150 : vector<1x1xf32> to vector<8x1024xf32>
    %156 = arith.addf %154, %155 : vector<8x1024xf32>
    %cst_66 = arith.constant 0.000000e+00 : f32
    %157 = vector.broadcast %cst_66 : f32 to vector<8x1024xf32>
    %158 = arith.maximumf %156, %157 : vector<8x1024xf32>
    %159 = vector.broadcast %152 : vector<1x1xf32> to vector<8x1024xf32>
    %160 = arith.mulf %158, %159 : vector<8x1024xf32>
    %161 = arith.addf %101, %160 : vector<8x1024xf32>
    %c0_67 = arith.constant 0 : index
    %c11 = arith.constant 11 : index
    %162 = memref.load %arg1[%c0_67, %c11] : memref<4x20xf32, #tpu.memory_space<smem>>
    %163 = vector.broadcast %162 : f32 to vector<1x1xf32>
    %c1_68 = arith.constant 1 : index
    %c11_69 = arith.constant 11 : index
    %164 = memref.load %arg1[%c1_68, %c11_69] : memref<4x20xf32, #tpu.memory_space<smem>>
    %165 = vector.broadcast %164 : f32 to vector<1x1xf32>
    %c2_70 = arith.constant 2 : index
    %c11_71 = arith.constant 11 : index
    %166 = memref.load %arg1[%c2_70, %c11_71] : memref<4x20xf32, #tpu.memory_space<smem>>
    %167 = vector.broadcast %166 : f32 to vector<1x1xf32>
    %168 = vector.broadcast %163 : vector<1x1xf32> to vector<8x1024xf32>
    %169 = arith.mulf %0, %168 : vector<8x1024xf32>
    %170 = vector.broadcast %165 : vector<1x1xf32> to vector<8x1024xf32>
    %171 = arith.addf %169, %170 : vector<8x1024xf32>
    %cst_72 = arith.constant 0.000000e+00 : f32
    %172 = vector.broadcast %cst_72 : f32 to vector<8x1024xf32>
    %173 = arith.maximumf %171, %172 : vector<8x1024xf32>
    %174 = vector.broadcast %167 : vector<1x1xf32> to vector<8x1024xf32>
    %175 = arith.mulf %173, %174 : vector<8x1024xf32>
    %176 = arith.addf %116, %175 : vector<8x1024xf32>
    %c0_73 = arith.constant 0 : index
    %c12 = arith.constant 12 : index
    %177 = memref.load %arg1[%c0_73, %c12] : memref<4x20xf32, #tpu.memory_space<smem>>
    %178 = vector.broadcast %177 : f32 to vector<1x1xf32>
    %c1_74 = arith.constant 1 : index
    %c12_75 = arith.constant 12 : index
    %179 = memref.load %arg1[%c1_74, %c12_75] : memref<4x20xf32, #tpu.memory_space<smem>>
    %180 = vector.broadcast %179 : f32 to vector<1x1xf32>
    %c2_76 = arith.constant 2 : index
    %c12_77 = arith.constant 12 : index
    %181 = memref.load %arg1[%c2_76, %c12_77] : memref<4x20xf32, #tpu.memory_space<smem>>
    %182 = vector.broadcast %181 : f32 to vector<1x1xf32>
    %183 = vector.broadcast %178 : vector<1x1xf32> to vector<8x1024xf32>
    %184 = arith.mulf %0, %183 : vector<8x1024xf32>
    %185 = vector.broadcast %180 : vector<1x1xf32> to vector<8x1024xf32>
    %186 = arith.addf %184, %185 : vector<8x1024xf32>
    %cst_78 = arith.constant 0.000000e+00 : f32
    %187 = vector.broadcast %cst_78 : f32 to vector<8x1024xf32>
    %188 = arith.maximumf %186, %187 : vector<8x1024xf32>
    %189 = vector.broadcast %182 : vector<1x1xf32> to vector<8x1024xf32>
    %190 = arith.mulf %188, %189 : vector<8x1024xf32>
    %191 = arith.addf %131, %190 : vector<8x1024xf32>
    %c0_79 = arith.constant 0 : index
    %c13 = arith.constant 13 : index
    %192 = memref.load %arg1[%c0_79, %c13] : memref<4x20xf32, #tpu.memory_space<smem>>
    %193 = vector.broadcast %192 : f32 to vector<1x1xf32>
    %c1_80 = arith.constant 1 : index
    %c13_81 = arith.constant 13 : index
    %194 = memref.load %arg1[%c1_80, %c13_81] : memref<4x20xf32, #tpu.memory_space<smem>>
    %195 = vector.broadcast %194 : f32 to vector<1x1xf32>
    %c2_82 = arith.constant 2 : index
    %c13_83 = arith.constant 13 : index
    %196 = memref.load %arg1[%c2_82, %c13_83] : memref<4x20xf32, #tpu.memory_space<smem>>
    %197 = vector.broadcast %196 : f32 to vector<1x1xf32>
    %198 = vector.broadcast %193 : vector<1x1xf32> to vector<8x1024xf32>
    %199 = arith.mulf %0, %198 : vector<8x1024xf32>
    %200 = vector.broadcast %195 : vector<1x1xf32> to vector<8x1024xf32>
    %201 = arith.addf %199, %200 : vector<8x1024xf32>
    %cst_84 = arith.constant 0.000000e+00 : f32
    %202 = vector.broadcast %cst_84 : f32 to vector<8x1024xf32>
    %203 = arith.maximumf %201, %202 : vector<8x1024xf32>
    %204 = vector.broadcast %197 : vector<1x1xf32> to vector<8x1024xf32>
    %205 = arith.mulf %203, %204 : vector<8x1024xf32>
    %206 = arith.addf %146, %205 : vector<8x1024xf32>
    %c0_85 = arith.constant 0 : index
    %c14 = arith.constant 14 : index
    %207 = memref.load %arg1[%c0_85, %c14] : memref<4x20xf32, #tpu.memory_space<smem>>
    %208 = vector.broadcast %207 : f32 to vector<1x1xf32>
    %c1_86 = arith.constant 1 : index
    %c14_87 = arith.constant 14 : index
    %209 = memref.load %arg1[%c1_86, %c14_87] : memref<4x20xf32, #tpu.memory_space<smem>>
    %210 = vector.broadcast %209 : f32 to vector<1x1xf32>
    %c2_88 = arith.constant 2 : index
    %c14_89 = arith.constant 14 : index
    %211 = memref.load %arg1[%c2_88, %c14_89] : memref<4x20xf32, #tpu.memory_space<smem>>
    %212 = vector.broadcast %211 : f32 to vector<1x1xf32>
    %213 = vector.broadcast %208 : vector<1x1xf32> to vector<8x1024xf32>
    %214 = arith.mulf %0, %213 : vector<8x1024xf32>
    %215 = vector.broadcast %210 : vector<1x1xf32> to vector<8x1024xf32>
    %216 = arith.addf %214, %215 : vector<8x1024xf32>
    %cst_90 = arith.constant 0.000000e+00 : f32
    %217 = vector.broadcast %cst_90 : f32 to vector<8x1024xf32>
    %218 = arith.maximumf %216, %217 : vector<8x1024xf32>
    %219 = vector.broadcast %212 : vector<1x1xf32> to vector<8x1024xf32>
    %220 = arith.mulf %218, %219 : vector<8x1024xf32>
    %221 = arith.addf %161, %220 : vector<8x1024xf32>
    %c0_91 = arith.constant 0 : index
    %c15 = arith.constant 15 : index
    %222 = memref.load %arg1[%c0_91, %c15] : memref<4x20xf32, #tpu.memory_space<smem>>
    %223 = vector.broadcast %222 : f32 to vector<1x1xf32>
    %c1_92 = arith.constant 1 : index
    %c15_93 = arith.constant 15 : index
    %224 = memref.load %arg1[%c1_92, %c15_93] : memref<4x20xf32, #tpu.memory_space<smem>>
    %225 = vector.broadcast %224 : f32 to vector<1x1xf32>
    %c2_94 = arith.constant 2 : index
    %c15_95 = arith.constant 15 : index
    %226 = memref.load %arg1[%c2_94, %c15_95] : memref<4x20xf32, #tpu.memory_space<smem>>
    %227 = vector.broadcast %226 : f32 to vector<1x1xf32>
    %228 = vector.broadcast %223 : vector<1x1xf32> to vector<8x1024xf32>
    %229 = arith.mulf %0, %228 : vector<8x1024xf32>
    %230 = vector.broadcast %225 : vector<1x1xf32> to vector<8x1024xf32>
    %231 = arith.addf %229, %230 : vector<8x1024xf32>
    %cst_96 = arith.constant 0.000000e+00 : f32
    %232 = vector.broadcast %cst_96 : f32 to vector<8x1024xf32>
    %233 = arith.maximumf %231, %232 : vector<8x1024xf32>
    %234 = vector.broadcast %227 : vector<1x1xf32> to vector<8x1024xf32>
    %235 = arith.mulf %233, %234 : vector<8x1024xf32>
    %236 = arith.addf %176, %235 : vector<8x1024xf32>
    %c0_97 = arith.constant 0 : index
    %c16 = arith.constant 16 : index
    %237 = memref.load %arg1[%c0_97, %c16] : memref<4x20xf32, #tpu.memory_space<smem>>
    %238 = vector.broadcast %237 : f32 to vector<1x1xf32>
    %c1_98 = arith.constant 1 : index
    %c16_99 = arith.constant 16 : index
    %239 = memref.load %arg1[%c1_98, %c16_99] : memref<4x20xf32, #tpu.memory_space<smem>>
    %240 = vector.broadcast %239 : f32 to vector<1x1xf32>
    %c2_100 = arith.constant 2 : index
    %c16_101 = arith.constant 16 : index
    %241 = memref.load %arg1[%c2_100, %c16_101] : memref<4x20xf32, #tpu.memory_space<smem>>
    %242 = vector.broadcast %241 : f32 to vector<1x1xf32>
    %243 = vector.broadcast %238 : vector<1x1xf32> to vector<8x1024xf32>
    %244 = arith.mulf %0, %243 : vector<8x1024xf32>
    %245 = vector.broadcast %240 : vector<1x1xf32> to vector<8x1024xf32>
    %246 = arith.addf %244, %245 : vector<8x1024xf32>
    %cst_102 = arith.constant 0.000000e+00 : f32
    %247 = vector.broadcast %cst_102 : f32 to vector<8x1024xf32>
    %248 = arith.maximumf %246, %247 : vector<8x1024xf32>
    %249 = vector.broadcast %242 : vector<1x1xf32> to vector<8x1024xf32>
    %250 = arith.mulf %248, %249 : vector<8x1024xf32>
    %251 = arith.addf %191, %250 : vector<8x1024xf32>
    %c0_103 = arith.constant 0 : index
    %c17 = arith.constant 17 : index
    %252 = memref.load %arg1[%c0_103, %c17] : memref<4x20xf32, #tpu.memory_space<smem>>
    %253 = vector.broadcast %252 : f32 to vector<1x1xf32>
    %c1_104 = arith.constant 1 : index
    %c17_105 = arith.constant 17 : index
    %254 = memref.load %arg1[%c1_104, %c17_105] : memref<4x20xf32, #tpu.memory_space<smem>>
    %255 = vector.broadcast %254 : f32 to vector<1x1xf32>
    %c2_106 = arith.constant 2 : index
    %c17_107 = arith.constant 17 : index
    %256 = memref.load %arg1[%c2_106, %c17_107] : memref<4x20xf32, #tpu.memory_space<smem>>
    %257 = vector.broadcast %256 : f32 to vector<1x1xf32>
    %258 = vector.broadcast %253 : vector<1x1xf32> to vector<8x1024xf32>
    %259 = arith.mulf %0, %258 : vector<8x1024xf32>
    %260 = vector.broadcast %255 : vector<1x1xf32> to vector<8x1024xf32>
    %261 = arith.addf %259, %260 : vector<8x1024xf32>
    %cst_108 = arith.constant 0.000000e+00 : f32
    %262 = vector.broadcast %cst_108 : f32 to vector<8x1024xf32>
    %263 = arith.maximumf %261, %262 : vector<8x1024xf32>
    %264 = vector.broadcast %257 : vector<1x1xf32> to vector<8x1024xf32>
    %265 = arith.mulf %263, %264 : vector<8x1024xf32>
    %266 = arith.addf %206, %265 : vector<8x1024xf32>
    %c0_109 = arith.constant 0 : index
    %c18 = arith.constant 18 : index
    %267 = memref.load %arg1[%c0_109, %c18] : memref<4x20xf32, #tpu.memory_space<smem>>
    %268 = vector.broadcast %267 : f32 to vector<1x1xf32>
    %c1_110 = arith.constant 1 : index
    %c18_111 = arith.constant 18 : index
    %269 = memref.load %arg1[%c1_110, %c18_111] : memref<4x20xf32, #tpu.memory_space<smem>>
    %270 = vector.broadcast %269 : f32 to vector<1x1xf32>
    %c2_112 = arith.constant 2 : index
    %c18_113 = arith.constant 18 : index
    %271 = memref.load %arg1[%c2_112, %c18_113] : memref<4x20xf32, #tpu.memory_space<smem>>
    %272 = vector.broadcast %271 : f32 to vector<1x1xf32>
    %273 = vector.broadcast %268 : vector<1x1xf32> to vector<8x1024xf32>
    %274 = arith.mulf %0, %273 : vector<8x1024xf32>
    %275 = vector.broadcast %270 : vector<1x1xf32> to vector<8x1024xf32>
    %276 = arith.addf %274, %275 : vector<8x1024xf32>
    %cst_114 = arith.constant 0.000000e+00 : f32
    %277 = vector.broadcast %cst_114 : f32 to vector<8x1024xf32>
    %278 = arith.maximumf %276, %277 : vector<8x1024xf32>
    %279 = vector.broadcast %272 : vector<1x1xf32> to vector<8x1024xf32>
    %280 = arith.mulf %278, %279 : vector<8x1024xf32>
    %281 = arith.addf %221, %280 : vector<8x1024xf32>
    %c0_115 = arith.constant 0 : index
    %c19 = arith.constant 19 : index
    %282 = memref.load %arg1[%c0_115, %c19] : memref<4x20xf32, #tpu.memory_space<smem>>
    %283 = vector.broadcast %282 : f32 to vector<1x1xf32>
    %c1_116 = arith.constant 1 : index
    %c19_117 = arith.constant 19 : index
    %284 = memref.load %arg1[%c1_116, %c19_117] : memref<4x20xf32, #tpu.memory_space<smem>>
    %285 = vector.broadcast %284 : f32 to vector<1x1xf32>
    %c2_118 = arith.constant 2 : index
    %c19_119 = arith.constant 19 : index
    %286 = memref.load %arg1[%c2_118, %c19_119] : memref<4x20xf32, #tpu.memory_space<smem>>
    %287 = vector.broadcast %286 : f32 to vector<1x1xf32>
    %288 = vector.broadcast %283 : vector<1x1xf32> to vector<8x1024xf32>
    %289 = arith.mulf %0, %288 : vector<8x1024xf32>
    %290 = vector.broadcast %285 : vector<1x1xf32> to vector<8x1024xf32>
    %291 = arith.addf %289, %290 : vector<8x1024xf32>
    %cst_120 = arith.constant 0.000000e+00 : f32
    %292 = vector.broadcast %cst_120 : f32 to vector<8x1024xf32>
    %293 = arith.maximumf %291, %292 : vector<8x1024xf32>
    %294 = vector.broadcast %287 : vector<1x1xf32> to vector<8x1024xf32>
    %295 = arith.mulf %293, %294 : vector<8x1024xf32>
    %296 = arith.addf %236, %295 : vector<8x1024xf32>
    %297 = arith.addf %251, %266 : vector<8x1024xf32>
    %298 = arith.addf %281, %296 : vector<8x1024xf32>
    %299 = arith.addf %297, %298 : vector<8x1024xf32>
    %c3_121 = arith.constant 3 : index
    %c0_122 = arith.constant 0 : index
    %300 = memref.load %arg1[%c3_121, %c0_122] : memref<4x20xf32, #tpu.memory_space<smem>>
    %301 = vector.broadcast %300 : f32 to vector<8x1024xf32>
    %302 = arith.addf %299, %301 : vector<8x1024xf32>
    %c0_123 = arith.constant 0 : index
    %c0_124 = arith.constant 0 : index
    %303 = vector.load %arg3[%c0_123, %c0_124] : memref<8x1024xf32, #tpu.memory_space<vmem>>, vector<8x1024xf32>
    tpu.vector_store %arg3[%c0_123, %c0_124], %302 {strides = array<i32>} : memref<8x1024xf32, #tpu.memory_space<vmem>>, vector<8x1024xf32>,
    return
  }
  func.func @transform_0(%arg0: i32, %arg1: memref<4x20xf32, #tpu.memory_space<smem>>) -> (i32, i32) {
    %c0_i32 = arith.constant 0 : i32
    %c0_i32_0 = arith.constant 0 : i32
    return %arg0, %c0_i32 : i32, i32
  }
  func.func @transform_1(%arg0: i32, %arg1: memref<4x20xf32, #tpu.memory_space<smem>>) -> (i32, i32) {
    %c0_i32 = arith.constant 0 : i32
    %c0_i32_0 = arith.constant 0 : i32
    return %arg0, %c0_i32 : i32, i32
  }
}

</mosaic_0001>

<llo_original>
// kernel: net_forward.1
$region0: #{net_forward.1}
  #allocation0 [shape = 'u32[]', space=smem, size = 0x4, offset = 0x4, fixed_abs, tag = 'smem constant byte address 0x4 - core index']
  #allocation1 [shape = 'u32[144,128]{1,0:T(1,128)}', space=vmem, size = 0x12000, scoped, tag = 'internal scratch']
  #allocation2 [shape = 's32[1]{0}', space=sflag, size = 0x4, scoped, tag = 'scoped memory for net_forward.1']
  #allocation3 [shape = 'u8[2048]{0}', space=smem, size = 0x800, scoped, tag = 'prefetched SMEM operand 0']
  %s0 = inlined_call_operand.vmem [shape: f32[4,20], index: 0, kind: input, shape index: {}]
  %s1 = inlined_call_operand.vmem [shape: f32[8,1024], index: 1, kind: input, shape index: {}]
  %s2 = inlined_call_operand.vmem [shape: f32[8,1024], index: 2, kind: output, shape index: {}]
  %s3 = sld [smem:[#allocation0]]
  $region14: #{net_forward.1} parent=0
    _
  %s5 = ssub.s32 1, %s3
  %s6 = scalar_select 0, %s5, %s3
  %s7 = sshll.u32 %s0, 4
  %s8 = int_to_ptr.vmem [resolvable:$true] %s7
  %10 = dma.vmem_to_smem %s8, 64, [#allocation3], [#allocation2]
  %11 = dma.done [#allocation2], 64
  %12 = sfence
  // Predicated region
  $region2: #{net_forward.1} parent=0 // pred_check
    _
  $region3: #{net_forward.1} parent=0 // pred_check_branch
    %14 = sbr.rel (0) target = $region5
  $region4: #{net_forward.1} parent=0 // pred_region
    _
  $region5: #{net_forward.1} parent=0 // pred_fallthru
    _
  %v15 = vld [vmem:[%s1] sm:$0xff]
  %v16 = vld [vmem:[%s1 + $0x8] sm:$0xff]
  %v17 = vld [vmem:[%s1 + $0x10] sm:$0xff]
  %v18 = vld [vmem:[%s1 + $0x18] sm:$0xff]
  %v19 = vld [vmem:[%s1 + $0x20] sm:$0xff]
  %v20 = vld [vmem:[%s1 + $0x28] sm:$0xff]
  %v21 = vld [vmem:[%s1 + $0x30] sm:$0xff]
  %v22 = vld [vmem:[%s1 + $0x38] sm:$0xff]
  %s23 = sld [smem:[#allocation3]]
  %s24 = sld [smem:[#allocation3 + $0x80]]
  %s25 = sld [smem:[#allocation3 + $0x100]]
  %v26 = vstv %s23
  %v27 = vmul.f32 %v15, %v26
  %v28 = vmul.f32 %v16, %v26
  %v29 = vmul.f32 %v17, %v26
  %v30 = vmul.f32 %v18, %v26
  %v31 = vmul.f32 %v19, %v26
  %v32 = vmul.f32 %v20, %v26
  %v33 = vmul.f32 %v21, %v26
  %v34 = vmul.f32 %v22, %v26
  %v35 = vstv %s24
  %v36 = vadd.f32 %v27, %v35
  %v37 = vadd.f32 %v28, %v35
  %v38 = vadd.f32 %v29, %v35
  %v39 = vadd.f32 %v30, %v35
  %v40 = vadd.f32 %v31, %v35
  %v41 = vadd.f32 %v32, %v35
  %v42 = vadd.f32 %v33, %v35
  %v43 = vadd.f32 %v34, %v35
  %v44 = vmax.f32 %v36, 0.0
  %v45 = vmax.f32 %v37, 0.0
  %v46 = vmax.f32 %v38, 0.0
  %v47 = vmax.f32 %v39, 0.0
  %v48 = vmax.f32 %v40, 0.0
  %v49 = vmax.f32 %v41, 0.0
  %v50 = vmax.f32 %v42, 0.0
  %v51 = vmax.f32 %v43, 0.0
  %v52 = vstv %s25
  %v53 = vmul.f32 %v44, %v52
  %v54 = vmul.f32 %v45, %v52
  %v55 = vmul.f32 %v46, %v52
  %v56 = vmul.f32 %v47, %v52
  %v57 = vmul.f32 %v48, %v52
  %v58 = vmul.f32 %v49, %v52
  %v59 = vmul.f32 %v50, %v52
  %v60 = vmul.f32 %v51, %v52
  %s61 = sld [smem:[#allocation3 + $0x1]]
  %s62 = sld [smem:[#allocation3 + $0x81]]
  %s63 = sld [smem:[#allocation3 + $0x101]]
  %v64 = vstv %s61
  %v65 = vmul.f32 %v15, %v64
  %v66 = vmul.f32 %v16, %v64
  %v67 = vmul.f32 %v17, %v64
  %v68 = vmul.f32 %v18, %v64
  %v69 = vmul.f32 %v19, %v64
  %v70 = vmul.f32 %v20, %v64
  %v71 = vmul.f32 %v21, %v64
  %v72 = vmul.f32 %v22, %v64
  %v73 = vstv %s62
  %v74 = vadd.f32 %v65, %v73
  %v75 = vadd.f32 %v66, %v73
  %v76 = vadd.f32 %v67, %v73
  %v77 = vadd.f32 %v68, %v73
  %v78 = vadd.f32 %v69, %v73
  %v79 = vadd.f32 %v70, %v73
  %v80 = vadd.f32 %v71, %v73
  %v81 = vadd.f32 %v72, %v73
  %v82 = vmax.f32 %v74, 0.0
  %v83 = vmax.f32 %v75, 0.0
  %v84 = vmax.f32 %v76, 0.0
  %v85 = vmax.f32 %v77, 0.0
  %v86 = vmax.f32 %v78, 0.0
  %v87 = vmax.f32 %v79, 0.0
  %v88 = vmax.f32 %v80, 0.0
  %v89 = vmax.f32 %v81, 0.0
  %v90 = vstv %s63
  %v91 = vmul.f32 %v82, %v90
  %v92 = vmul.f32 %v83, %v90
  %v93 = vmul.f32 %v84, %v90
  %v94 = vmul.f32 %v85, %v90
  %v95 = vmul.f32 %v86, %v90
  %v96 = vmul.f32 %v87, %v90
  %v97 = vmul.f32 %v88, %v90
  %v98 = vmul.f32 %v89, %v90
  %s99 = sld [smem:[#allocation3 + $0x2]]
  %s100 = sld [smem:[#allocation3 + $0x82]]
  %s101 = sld [smem:[#allocation3 + $0x102]]
  %v102 = vstv %s99
  %v103 = vmul.f32 %v15, %v102
  %v104 = vmul.f32 %v16, %v102
  %v105 = vmul.f32 %v17, %v102
  %v106 = vmul.f32 %v18, %v102
  %v107 = vmul.f32 %v19, %v102
  %v108 = vmul.f32 %v20, %v102
  %v109 = vmul.f32 %v21, %v102
  %v110 = vmul.f32 %v22, %v102
  %v111 = vstv %s100
  %v112 = vadd.f32 %v103, %v111
  %v113 = vadd.f32 %v104, %v111
  %v114 = vadd.f32 %v105, %v111
  %v115 = vadd.f32 %v106, %v111
  %v116 = vadd.f32 %v107, %v111
  %v117 = vadd.f32 %v108, %v111
  %v118 = vadd.f32 %v109, %v111
  %v119 = vadd.f32 %v110, %v111
  %v120 = vmax.f32 %v112, 0.0
  %v121 = vmax.f32 %v113, 0.0
  %v122 = vmax.f32 %v114, 0.0
  %v123 = vmax.f32 %v115, 0.0
  %v124 = vmax.f32 %v116, 0.0
  %v125 = vmax.f32 %v117, 0.0
  %v126 = vmax.f32 %v118, 0.0
  %v127 = vmax.f32 %v119, 0.0
  %v128 = vstv %s101
  %v129 = vmul.f32 %v120, %v128
  %v130 = vmul.f32 %v121, %v128
  %v131 = vmul.f32 %v122, %v128
  %v132 = vmul.f32 %v123, %v128
  %v133 = vmul.f32 %v124, %v128
  %v134 = vmul.f32 %v125, %v128
  %v135 = vmul.f32 %v126, %v128
  %v136 = vmul.f32 %v127, %v128
  %s137 = sld [smem:[#allocation3 + $0x3]]
  %s138 = sld [smem:[#allocation3 + $0x83]]
  %s139 = sld [smem:[#allocation3 + $0x103]]
  %v140 = vstv %s137
  %v141 = vmul.f32 %v15, %v140
  %v142 = vmul.f32 %v16, %v140
  %v143 = vmul.f32 %v17, %v140
  %v144 = vmul.f32 %v18, %v140
  %v145 = vmul.f32 %v19, %v140
  %v146 = vmul.f32 %v20, %v140
  %v147 = vmul.f32 %v21, %v140
  %v148 = vmul.f32 %v22, %v140
  %v149 = vstv %s138
  %v150 = vadd.f32 %v141, %v149
  %v151 = vadd.f32 %v142, %v149
  %v152 = vadd.f32 %v143, %v149
  %v153 = vadd.f32 %v144, %v149
  %v154 = vadd.f32 %v145, %v149
  %v155 = vadd.f32 %v146, %v149
  %v156 = vadd.f32 %v147, %v149
  %v157 = vadd.f32 %v148, %v149
  %v158 = vmax.f32 %v150, 0.0
  %v159 = vmax.f32 %v151, 0.0
  %v160 = vmax.f32 %v152, 0.0
  %v161 = vmax.f32 %v153, 0.0
  %v162 = vmax.f32 %v154, 0.0
  %v163 = vmax.f32 %v155, 0.0
  %v164 = vmax.f32 %v156, 0.0
  %v165 = vmax.f32 %v157, 0.0
  %v166 = vstv %s139
  %v167 = vmul.f32 %v158, %v166
  %v168 = vmul.f32 %v159, %v166
  %v169 = vmul.f32 %v160, %v166
  %v170 = vmul.f32 %v161, %v166
  %v171 = vmul.f32 %v162, %v166
  %v172 = vmul.f32 %v163, %v166
  %v173 = vmul.f32 %v164, %v166
  %v174 = vmul.f32 %v165, %v166
  %s175 = sld [smem:[#allocation3 + $0x4]]
  %s176 = sld [smem:[#allocation3 + $0x84]]
  %s177 = sld [smem:[#allocation3 + $0x104]]
  %v178 = vstv %s175
  %v179 = vmul.f32 %v15, %v178
  %v180 = vmul.f32 %v16, %v178
  %v181 = vmul.f32 %v17, %v178
  %v182 = vmul.f32 %v18, %v178
  %v183 = vmul.f32 %v19, %v178
  %v184 = vmul.f32 %v20, %v178
  %v185 = vmul.f32 %v21, %v178
  %v186 = vmul.f32 %v22, %v178
  %v187 = vstv %s176
  %v188 = vadd.f32 %v179, %v187
  %v189 = vadd.f32 %v180, %v187
  %v190 = vadd.f32 %v181, %v187
  %v191 = vadd.f32 %v182, %v187
  %v192 = vadd.f32 %v183, %v187
  %v193 = vadd.f32 %v184, %v187
  %v194 = vadd.f32 %v185, %v187
  %v195 = vadd.f32 %v186, %v187
  %v196 = vmax.f32 %v188, 0.0
  %v197 = vmax.f32 %v189, 0.0
  %v198 = vmax.f32 %v190, 0.0
  %v199 = vmax.f32 %v191, 0.0
  %v200 = vmax.f32 %v192, 0.0
  %v201 = vmax.f32 %v193, 0.0
  %v202 = vmax.f32 %v194, 0.0
  %v203 = vmax.f32 %v195, 0.0
  %v204 = vstv %s177
  %v205 = vmul.f32 %v196, %v204
  %v206 = vmul.f32 %v197, %v204
  %v207 = vmul.f32 %v198, %v204
  %v208 = vmul.f32 %v199, %v204
  %v209 = vmul.f32 %v200, %v204
  %v210 = vmul.f32 %v201, %v204
  %v211 = vmul.f32 %v202, %v204
  %v212 = vmul.f32 %v203, %v204
  %v213 = vadd.f32 %v53, %v205
  %v214 = vadd.f32 %v54, %v206
  %v215 = vadd.f32 %v55, %v207
  %v216 = vadd.f32 %v56, %v208
  %v217 = vadd.f32 %v57, %v209
  %v218 = vadd.f32 %v58, %v210
  %v219 = vadd.f32 %v59, %v211
  %v220 = vadd.f32 %v60, %v212
  %s221 = sld [smem:[#allocation3 + $0x5]]
  %s222 = sld [smem:[#allocation3 + $0x85]]
  %s223 = sld [smem:[#allocation3 + $0x105]]
  %v224 = vstv %s221
  %v225 = vmul.f32 %v15, %v224
  %v226 = vmul.f32 %v16, %v224
  %v227 = vmul.f32 %v17, %v224
  %v228 = vmul.f32 %v18, %v224
  %v229 = vmul.f32 %v19, %v224
  %v230 = vmul.f32 %v20, %v224
  %v231 = vmul.f32 %v21, %v224
  %v232 = vmul.f32 %v22, %v224
  %v233 = vstv %s222
  %v234 = vadd.f32 %v225, %v233
  %v235 = vadd.f32 %v226, %v233
  %v236 = vadd.f32 %v227, %v233
  %v237 = vadd.f32 %v228, %v233
  %v238 = vadd.f32 %v229, %v233
  %v239 = vadd.f32 %v230, %v233
  %v240 = vadd.f32 %v231, %v233
  %v241 = vadd.f32 %v232, %v233
  %v242 = vmax.f32 %v234, 0.0
  %v243 = vmax.f32 %v235, 0.0
  %v244 = vmax.f32 %v236, 0.0
  %v245 = vmax.f32 %v237, 0.0
  %v246 = vmax.f32 %v238, 0.0
  %v247 = vmax.f32 %v239, 0.0
  %v248 = vmax.f32 %v240, 0.0
  %v249 = vmax.f32 %v241, 0.0
  %v250 = vstv %s223
  %v251 = vmul.f32 %v242, %v250
  %v252 = vmul.f32 %v243, %v250
  %v253 = vmul.f32 %v244, %v250
  %v254 = vmul.f32 %v245, %v250
  %v255 = vmul.f32 %v246, %v250
  %v256 = vmul.f32 %v247, %v250
  %v257 = vmul.f32 %v248, %v250
  %v258 = vmul.f32 %v249, %v250
  %v259 = vadd.f32 %v91, %v251
  %v260 = vadd.f32 %v92, %v252
  %v261 = vadd.f32 %v93, %v253
  %v262 = vadd.f32 %v94, %v254
  %v263 = vadd.f32 %v95, %v255
  %v264 = vadd.f32 %v96, %v256
  %v265 = vadd.f32 %v97, %v257
  %v266 = vadd.f32 %v98, %v258
  %s267 = sld [smem:[#allocation3 + $0x6]]
  %s268 = sld [smem:[#allocation3 + $0x86]]
  %s269 = sld [smem:[#allocation3 + $0x106]]
  %v270 = vstv %s267
  %v271 = vmul.f32 %v15, %v270
  %v272 = vmul.f32 %v16, %v270
  %v273 = vmul.f32 %v17, %v270
  %v274 = vmul.f32 %v18, %v270
  %v275 = vmul.f32 %v19, %v270
  %v276 = vmul.f32 %v20, %v270
  %v277 = vmul.f32 %v21, %v270
  %v278 = vmul.f32 %v22, %v270
  %v279 = vstv %s268
  %v280 = vadd.f32 %v271, %v279
  %v281 = vadd.f32 %v272, %v279
  %v282 = vadd.f32 %v273, %v279
  %v283 = vadd.f32 %v274, %v279
  %v284 = vadd.f32 %v275, %v279
  %v285 = vadd.f32 %v276, %v279
  %v286 = vadd.f32 %v277, %v279
  %v287 = vadd.f32 %v278, %v279
  %v288 = vmax.f32 %v280, 0.0
  %v289 = vmax.f32 %v281, 0.0
  %v290 = vmax.f32 %v282, 0.0
  %v291 = vmax.f32 %v283, 0.0
  %v292 = vmax.f32 %v284, 0.0
  %v293 = vmax.f32 %v285, 0.0
  %v294 = vmax.f32 %v286, 0.0
  %v295 = vmax.f32 %v287, 0.0
  %v296 = vstv %s269
  %v297 = vmul.f32 %v288, %v296
  %v298 = vmul.f32 %v289, %v296
  %v299 = vmul.f32 %v290, %v296
  %v300 = vmul.f32 %v291, %v296
  %v301 = vmul.f32 %v292, %v296
  %v302 = vmul.f32 %v293, %v296
  %v303 = vmul.f32 %v294, %v296
  %v304 = vmul.f32 %v295, %v296
  %v305 = vadd.f32 %v129, %v297
  %v306 = vadd.f32 %v130, %v298
  %v307 = vadd.f32 %v131, %v299
  %v308 = vadd.f32 %v132, %v300
  %v309 = vadd.f32 %v133, %v301
  %v310 = vadd.f32 %v134, %v302
  %v311 = vadd.f32 %v135, %v303
  %v312 = vadd.f32 %v136, %v304
  %s313 = sld [smem:[#allocation3 + $0x7]]
  %s314 = sld [smem:[#allocation3 + $0x87]]
  %s315 = sld [smem:[#allocation3 + $0x107]]
  %v316 = vstv %s313
  %v317 = vmul.f32 %v15, %v316
  %v318 = vmul.f32 %v16, %v316
  %v319 = vmul.f32 %v17, %v316
  %v320 = vmul.f32 %v18, %v316
  %v321 = vmul.f32 %v19, %v316
  %v322 = vmul.f32 %v20, %v316
  %v323 = vmul.f32 %v21, %v316
  %v324 = vmul.f32 %v22, %v316
  %v325 = vstv %s314
  %v326 = vadd.f32 %v317, %v325
  %v327 = vadd.f32 %v318, %v325
  %v328 = vadd.f32 %v319, %v325
  %v329 = vadd.f32 %v320, %v325
  %v330 = vadd.f32 %v321, %v325
  %v331 = vadd.f32 %v322, %v325
  %v332 = vadd.f32 %v323, %v325
  %v333 = vadd.f32 %v324, %v325
  %v334 = vmax.f32 %v326, 0.0
  %v335 = vmax.f32 %v327, 0.0
  %v336 = vmax.f32 %v328, 0.0
  %v337 = vmax.f32 %v329, 0.0
  %v338 = vmax.f32 %v330, 0.0
  %v339 = vmax.f32 %v331, 0.0
  %v340 = vmax.f32 %v332, 0.0
  %v341 = vmax.f32 %v333, 0.0
  %v342 = vstv %s315
  %v343 = vmul.f32 %v334, %v342
  %v344 = vmul.f32 %v335, %v342
  %v345 = vmul.f32 %v336, %v342
  %v346 = vmul.f32 %v337, %v342
  %v347 = vmul.f32 %v338, %v342
  %v348 = vmul.f32 %v339, %v342
  %v349 = vmul.f32 %v340, %v342
  %v350 = vmul.f32 %v341, %v342
  %v351 = vadd.f32 %v167, %v343
  %v352 = vadd.f32 %v168, %v344
  %v353 = vadd.f32 %v169, %v345
  %v354 = vadd.f32 %v170, %v346
  %v355 = vadd.f32 %v171, %v347
  %v356 = vadd.f32 %v172, %v348
  %v357 = vadd.f32 %v173, %v349
  %v358 = vadd.f32 %v174, %v350
  %s359 = sld [smem:[#allocation3 + $0x8]]
  %s360 = sld [smem:[#allocation3 + $0x88]]
  %s361 = sld [smem:[#allocation3 + $0x108]]
  %v362 = vstv %s359
  %v363 = vmul.f32 %v15, %v362
  %v364 = vmul.f32 %v16, %v362
  %v365 = vmul.f32 %v17, %v362
  %v366 = vmul.f32 %v18, %v362
  %v367 = vmul.f32 %v19, %v362
  %v368 = vmul.f32 %v20, %v362
  %v369 = vmul.f32 %v21, %v362
  %v370 = vmul.f32 %v22, %v362
  %v371 = vstv %s360
  %v372 = vadd.f32 %v363, %v371
  %v373 = vadd.f32 %v364, %v371
  %v374 = vadd.f32 %v365, %v371
  %v375 = vadd.f32 %v366, %v371
  %v376 = vadd.f32 %v367, %v371
  %v377 = vadd.f32 %v368, %v371
  %v378 = vadd.f32 %v369, %v371
  %v379 = vadd.f32 %v370, %v371
  %v380 = vmax.f32 %v372, 0.0
  %v381 = vmax.f32 %v373, 0.0
  %v382 = vmax.f32 %v374, 0.0
  %v383 = vmax.f32 %v375, 0.0
  %v384 = vmax.f32 %v376, 0.0
  %v385 = vmax.f32 %v377, 0.0
  %v386 = vmax.f32 %v378, 0.0
  %v387 = vmax.f32 %v379, 0.0
  %v388 = vstv %s361
  %v389 = vmul.f32 %v380, %v388
  %v390 = vmul.f32 %v381, %v388
  %v391 = vmul.f32 %v382, %v388
  %v392 = vmul.f32 %v383, %v388
  %v393 = vmul.f32 %v384, %v388
  %v394 = vmul.f32 %v385, %v388
  %v395 = vmul.f32 %v386, %v388
  %v396 = vmul.f32 %v387, %v388
  %v397 = vadd.f32 %v213, %v389
  %v398 = vadd.f32 %v214, %v390
  %v399 = vadd.f32 %v215, %v391
  %v400 = vadd.f32 %v216, %v392
  %v401 = vadd.f32 %v217, %v393
  %v402 = vadd.f32 %v218, %v394
  %v403 = vadd.f32 %v219, %v395
  %v404 = vadd.f32 %v220, %v396
  %s405 = sld [smem:[#allocation3 + $0x9]]
  %s406 = sld [smem:[#allocation3 + $0x89]]
  %s407 = sld [smem:[#allocation3 + $0x109]]
  %v408 = vstv %s405
  %v409 = vmul.f32 %v15, %v408
  %v410 = vmul.f32 %v16, %v408
  %v411 = vmul.f32 %v17, %v408
  %v412 = vmul.f32 %v18, %v408
  %v413 = vmul.f32 %v19, %v408
  %v414 = vmul.f32 %v20, %v408
  %v415 = vmul.f32 %v21, %v408
  %v416 = vmul.f32 %v22, %v408
  %v417 = vstv %s406
  %v418 = vadd.f32 %v409, %v417
  %v419 = vadd.f32 %v410, %v417
  %v420 = vadd.f32 %v411, %v417
  %v421 = vadd.f32 %v412, %v417
  %v422 = vadd.f32 %v413, %v417
  %v423 = vadd.f32 %v414, %v417
  %v424 = vadd.f32 %v415, %v417
  %v425 = vadd.f32 %v416, %v417
  %v426 = vmax.f32 %v418, 0.0
  %v427 = vmax.f32 %v419, 0.0
  %v428 = vmax.f32 %v420, 0.0
  %v429 = vmax.f32 %v421, 0.0
  %v430 = vmax.f32 %v422, 0.0
  %v431 = vmax.f32 %v423, 0.0
  %v432 = vmax.f32 %v424, 0.0
  %v433 = vmax.f32 %v425, 0.0
  %v434 = vstv %s407
  %v435 = vmul.f32 %v426, %v434
  %v436 = vmul.f32 %v427, %v434
  %v437 = vmul.f32 %v428, %v434
  %v438 = vmul.f32 %v429, %v434
  %v439 = vmul.f32 %v430, %v434
  %v440 = vmul.f32 %v431, %v434
  %v441 = vmul.f32 %v432, %v434
  %v442 = vmul.f32 %v433, %v434
  %v443 = vadd.f32 %v259, %v435
  %v444 = vadd.f32 %v260, %v436
  %v445 = vadd.f32 %v261, %v437
  %v446 = vadd.f32 %v262, %v438
  %v447 = vadd.f32 %v263, %v439
  %v448 = vadd.f32 %v264, %v440
  %v449 = vadd.f32 %v265, %v441
  %v450 = vadd.f32 %v266, %v442
  %s451 = sld [smem:[#allocation3 + $0xa]]
  %s452 = sld [smem:[#allocation3 + $0x8a]]
  %s453 = sld [smem:[#allocation3 + $0x10a]]
  %v454 = vstv %s451
  %v455 = vmul.f32 %v15, %v454
  %v456 = vmul.f32 %v16, %v454
  %v457 = vmul.f32 %v17, %v454
  %v458 = vmul.f32 %v18, %v454
  %v459 = vmul.f32 %v19, %v454
  %v460 = vmul.f32 %v20, %v454
  %v461 = vmul.f32 %v21, %v454
  %v462 = vmul.f32 %v22, %v454
  %v463 = vstv %s452
  %v464 = vadd.f32 %v455, %v463
  %v465 = vadd.f32 %v456, %v463
  %v466 = vadd.f32 %v457, %v463
  %v467 = vadd.f32 %v458, %v463
  %v468 = vadd.f32 %v459, %v463
  %v469 = vadd.f32 %v460, %v463
  %v470 = vadd.f32 %v461, %v463
  %v471 = vadd.f32 %v462, %v463
  %v472 = vmax.f32 %v464, 0.0
  %v473 = vmax.f32 %v465, 0.0
  %v474 = vmax.f32 %v466, 0.0
  %v475 = vmax.f32 %v467, 0.0
  %v476 = vmax.f32 %v468, 0.0
  %v477 = vmax.f32 %v469, 0.0
  %v478 = vmax.f32 %v470, 0.0
  %v479 = vmax.f32 %v471, 0.0
  %v480 = vstv %s453
  %v481 = vmul.f32 %v472, %v480
  %v482 = vmul.f32 %v473, %v480
  %v483 = vmul.f32 %v474, %v480
  %v484 = vmul.f32 %v475, %v480
  %v485 = vmul.f32 %v476, %v480
  %v486 = vmul.f32 %v477, %v480
  %v487 = vmul.f32 %v478, %v480
  %v488 = vmul.f32 %v479, %v480
  %v489 = vadd.f32 %v305, %v481
  %v490 = vadd.f32 %v306, %v482
  %v491 = vadd.f32 %v307, %v483
  %v492 = vadd.f32 %v308, %v484
  %v493 = vadd.f32 %v309, %v485
  %v494 = vadd.f32 %v310, %v486
  %v495 = vadd.f32 %v311, %v487
  %v496 = vadd.f32 %v312, %v488
  %s497 = sld [smem:[#allocation3 + $0xb]]
  %s498 = sld [smem:[#allocation3 + $0x8b]]
  %s499 = sld [smem:[#allocation3 + $0x10b]]
  %v500 = vstv %s497
  %v501 = vmul.f32 %v15, %v500
  %v502 = vmul.f32 %v16, %v500
  %v503 = vmul.f32 %v17, %v500
  %v504 = vmul.f32 %v18, %v500
  %v505 = vmul.f32 %v19, %v500
  %v506 = vmul.f32 %v20, %v500
  %v507 = vmul.f32 %v21, %v500
  %v508 = vmul.f32 %v22, %v500
  %v509 = vstv %s498
  %v510 = vadd.f32 %v501, %v509
  %v511 = vadd.f32 %v502, %v509
  %v512 = vadd.f32 %v503, %v509
  %v513 = vadd.f32 %v504, %v509
  %v514 = vadd.f32 %v505, %v509
  %v515 = vadd.f32 %v506, %v509
  %v516 = vadd.f32 %v507, %v509
  %v517 = vadd.f32 %v508, %v509
  %v518 = vmax.f32 %v510, 0.0
  %v519 = vmax.f32 %v511, 0.0
  %v520 = vmax.f32 %v512, 0.0
  %v521 = vmax.f32 %v513, 0.0
  %v522 = vmax.f32 %v514, 0.0
  %v523 = vmax.f32 %v515, 0.0
  %v524 = vmax.f32 %v516, 0.0
  %v525 = vmax.f32 %v517, 0.0
  %v526 = vstv %s499
  %v527 = vmul.f32 %v518, %v526
  %v528 = vmul.f32 %v519, %v526
  %v529 = vmul.f32 %v520, %v526
  %v530 = vmul.f32 %v521, %v526
  %v531 = vmul.f32 %v522, %v526
  %v532 = vmul.f32 %v523, %v526
  %v533 = vmul.f32 %v524, %v526
  %v534 = vmul.f32 %v525, %v526
  %v535 = vadd.f32 %v351, %v527
  %v536 = vadd.f32 %v352, %v528
  %v537 = vadd.f32 %v353, %v529
  %v538 = vadd.f32 %v354, %v530
  %v539 = vadd.f32 %v355, %v531
  %v540 = vadd.f32 %v356, %v532
  %v541 = vadd.f32 %v357, %v533
  %v542 = vadd.f32 %v358, %v534
  %s543 = sld [smem:[#allocation3 + $0xc]]
  %s544 = sld [smem:[#allocation3 + $0x8c]]
  %s545 = sld [smem:[#allocation3 + $0x10c]]
  %v546 = vstv %s543
  %v547 = vmul.f32 %v15, %v546
  %v548 = vmul.f32 %v16, %v546
  %v549 = vmul.f32 %v17, %v546
  %v550 = vmul.f32 %v18, %v546
  %v551 = vmul.f32 %v19, %v546
  %v552 = vmul.f32 %v20, %v546
  %v553 = vmul.f32 %v21, %v546
  %v554 = vmul.f32 %v22, %v546
  %v555 = vstv %s544
  %v556 = vadd.f32 %v547, %v555
  %v557 = vadd.f32 %v548, %v555
  %v558 = vadd.f32 %v549, %v555
  %v559 = vadd.f32 %v550, %v555
  %v560 = vadd.f32 %v551, %v555
  %v561 = vadd.f32 %v552, %v555
  %v562 = vadd.f32 %v553, %v555
  %v563 = vadd.f32 %v554, %v555
  %v564 = vmax.f32 %v556, 0.0
  %v565 = vmax.f32 %v557, 0.0
  %v566 = vmax.f32 %v558, 0.0
  %v567 = vmax.f32 %v559, 0.0
  %v568 = vmax.f32 %v560, 0.0
  %v569 = vmax.f32 %v561, 0.0
  %v570 = vmax.f32 %v562, 0.0
  %v571 = vmax.f32 %v563, 0.0
  %v572 = vstv %s545
  %v573 = vmul.f32 %v564, %v572
  %v574 = vmul.f32 %v565, %v572
  %v575 = vmul.f32 %v566, %v572
  %v576 = vmul.f32 %v567, %v572
  %v577 = vmul.f32 %v568, %v572
  %v578 = vmul.f32 %v569, %v572
  %v579 = vmul.f32 %v570, %v572
  %v580 = vmul.f32 %v571, %v572
  %v581 = vadd.f32 %v397, %v573
  %v582 = vadd.f32 %v398, %v574
  %v583 = vadd.f32 %v399, %v575
  %v584 = vadd.f32 %v400, %v576
  %v585 = vadd.f32 %v401, %v577
  %v586 = vadd.f32 %v402, %v578
  %v587 = vadd.f32 %v403, %v579
  %v588 = vadd.f32 %v404, %v580
  %s589 = sld [smem:[#allocation3 + $0xd]]
  %s590 = sld [smem:[#allocation3 + $0x8d]]
  %s591 = sld [smem:[#allocation3 + $0x10d]]
  %v592 = vstv %s589
  %v593 = vmul.f32 %v15, %v592
  %v594 = vmul.f32 %v16, %v592
  %v595 = vmul.f32 %v17, %v592
  %v596 = vmul.f32 %v18, %v592
  %v597 = vmul.f32 %v19, %v592
  %v598 = vmul.f32 %v20, %v592
  %v599 = vmul.f32 %v21, %v592
  %v600 = vmul.f32 %v22, %v592
  %v601 = vstv %s590
  %v602 = vadd.f32 %v593, %v601
  %v603 = vadd.f32 %v594, %v601
  %v604 = vadd.f32 %v595, %v601
  %v605 = vadd.f32 %v596, %v601
  %v606 = vadd.f32 %v597, %v601
  %v607 = vadd.f32 %v598, %v601
  %v608 = vadd.f32 %v599, %v601
  %v609 = vadd.f32 %v600, %v601
  %v610 = vmax.f32 %v602, 0.0
  %v611 = vmax.f32 %v603, 0.0
  %v612 = vmax.f32 %v604, 0.0
  %v613 = vmax.f32 %v605, 0.0
  %v614 = vmax.f32 %v606, 0.0
  %v615 = vmax.f32 %v607, 0.0
  %v616 = vmax.f32 %v608, 0.0
  %v617 = vmax.f32 %v609, 0.0
  %v618 = vstv %s591
  %v619 = vmul.f32 %v610, %v618
  %v620 = vmul.f32 %v611, %v618
  %v621 = vmul.f32 %v612, %v618
  %v622 = vmul.f32 %v613, %v618
  %v623 = vmul.f32 %v614, %v618
  %v624 = vmul.f32 %v615, %v618
  %v625 = vmul.f32 %v616, %v618
  %v626 = vmul.f32 %v617, %v618
  %v627 = vadd.f32 %v443, %v619
  %v628 = vadd.f32 %v444, %v620
  %v629 = vadd.f32 %v445, %v621
  %v630 = vadd.f32 %v446, %v622
  %v631 = vadd.f32 %v447, %v623
  %v632 = vadd.f32 %v448, %v624
  %v633 = vadd.f32 %v449, %v625
  %v634 = vadd.f32 %v450, %v626
  %s635 = sld [smem:[#allocation3 + $0xe]]
  %s636 = sld [smem:[#allocation3 + $0x8e]]
  %s637 = sld [smem:[#allocation3 + $0x10e]]
  %v638 = vstv %s635
  %v639 = vmul.f32 %v15, %v638
  %v640 = vmul.f32 %v16, %v638
  %v641 = vmul.f32 %v17, %v638
  %v642 = vmul.f32 %v18, %v638
  %v643 = vmul.f32 %v19, %v638
  %v644 = vmul.f32 %v20, %v638
  %v645 = vmul.f32 %v21, %v638
  %v646 = vmul.f32 %v22, %v638
  %v647 = vstv %s636
  %v648 = vadd.f32 %v639, %v647
  %v649 = vadd.f32 %v640, %v647
  %v650 = vadd.f32 %v641, %v647
  %v651 = vadd.f32 %v642, %v647
  %v652 = vadd.f32 %v643, %v647
  %v653 = vadd.f32 %v644, %v647
  %v654 = vadd.f32 %v645, %v647
  %v655 = vadd.f32 %v646, %v647
  %v656 = vmax.f32 %v648, 0.0
  %v657 = vmax.f32 %v649, 0.0
  %v658 = vmax.f32 %v650, 0.0
  %v659 = vmax.f32 %v651, 0.0
  %v660 = vmax.f32 %v652, 0.0
  %v661 = vmax.f32 %v653, 0.0
  %v662 = vmax.f32 %v654, 0.0
  %v663 = vmax.f32 %v655, 0.0
  %v664 = vstv %s637
  %v665 = vmul.f32 %v656, %v664
  %v666 = vmul.f32 %v657, %v664
  %v667 = vmul.f32 %v658, %v664
  %v668 = vmul.f32 %v659, %v664
  %v669 = vmul.f32 %v660, %v664
  %v670 = vmul.f32 %v661, %v664
  %v671 = vmul.f32 %v662, %v664
  %v672 = vmul.f32 %v663, %v664
  %v673 = vadd.f32 %v489, %v665
  %v674 = vadd.f32 %v490, %v666
  %v675 = vadd.f32 %v491, %v667
  %v676 = vadd.f32 %v492, %v668
  %v677 = vadd.f32 %v493, %v669
  %v678 = vadd.f32 %v494, %v670
  %v679 = vadd.f32 %v495, %v671
  %v680 = vadd.f32 %v496, %v672
  %s681 = sld [smem:[#allocation3 + $0xf]]
  %s682 = sld [smem:[#allocation3 + $0x8f]]
  %s683 = sld [smem:[#allocation3 + $0x10f]]
  %v684 = vstv %s681
  %v685 = vmul.f32 %v15, %v684
  %v686 = vmul.f32 %v16, %v684
  %v687 = vmul.f32 %v17, %v684
  %v688 = vmul.f32 %v18, %v684
  %v689 = vmul.f32 %v19, %v684
  %v690 = vmul.f32 %v20, %v684
  %v691 = vmul.f32 %v21, %v684
  %v692 = vmul.f32 %v22, %v684
  %v693 = vstv %s682
  %v694 = vadd.f32 %v685, %v693
  %v695 = vadd.f32 %v686, %v693
  %v696 = vadd.f32 %v687, %v693
  %v697 = vadd.f32 %v688, %v693
  %v698 = vadd.f32 %v689, %v693
  %v699 = vadd.f32 %v690, %v693
  %v700 = vadd.f32 %v691, %v693
  %v701 = vadd.f32 %v692, %v693
  %v702 = vmax.f32 %v694, 0.0
  %v703 = vmax.f32 %v695, 0.0
  %v704 = vmax.f32 %v696, 0.0
  %v705 = vmax.f32 %v697, 0.0
  %v706 = vmax.f32 %v698, 0.0
  %v707 = vmax.f32 %v699, 0.0
  %v708 = vmax.f32 %v700, 0.0
  %v709 = vmax.f32 %v701, 0.0
  %v710 = vstv %s683
  %v711 = vmul.f32 %v702, %v710
  %v712 = vmul.f32 %v703, %v710
  %v713 = vmul.f32 %v704, %v710
  %v714 = vmul.f32 %v705, %v710
  %v715 = vmul.f32 %v706, %v710
  %v716 = vmul.f32 %v707, %v710
  %v717 = vmul.f32 %v708, %v710
  %v718 = vmul.f32 %v709, %v710
  %v719 = vadd.f32 %v535, %v711
  %v720 = vadd.f32 %v536, %v712
  %v721 = vadd.f32 %v537, %v713
  %v722 = vadd.f32 %v538, %v714
  %v723 = vadd.f32 %v539, %v715
  %v724 = vadd.f32 %v540, %v716
  %v725 = vadd.f32 %v541, %v717
  %v726 = vadd.f32 %v542, %v718
  %s727 = sld [smem:[#allocation3 + $0x10]]
  %s728 = sld [smem:[#allocation3 + $0x90]]
  %s729 = sld [smem:[#allocation3 + $0x110]]
  %v730 = vstv %s727
  %v731 = vmul.f32 %v15, %v730
  %v732 = vmul.f32 %v16, %v730
  %v733 = vmul.f32 %v17, %v730
  %v734 = vmul.f32 %v18, %v730
  %v735 = vmul.f32 %v19, %v730
  %v736 = vmul.f32 %v20, %v730
  %v737 = vmul.f32 %v21, %v730
  %v738 = vmul.f32 %v22, %v730
  %v739 = vstv %s728
  %v740 = vadd.f32 %v731, %v739
  %v741 = vadd.f32 %v732, %v739
  %v742 = vadd.f32 %v733, %v739
  %v743 = vadd.f32 %v734, %v739
  %v744 = vadd.f32 %v735, %v739
  %v745 = vadd.f32 %v736, %v739
  %v746 = vadd.f32 %v737, %v739
  %v747 = vadd.f32 %v738, %v739
  %v748 = vmax.f32 %v740, 0.0
  %v749 = vmax.f32 %v741, 0.0
  %v750 = vmax.f32 %v742, 0.0
  %v751 = vmax.f32 %v743, 0.0
  %v752 = vmax.f32 %v744, 0.0
  %v753 = vmax.f32 %v745, 0.0
  %v754 = vmax.f32 %v746, 0.0
  %v755 = vmax.f32 %v747, 0.0
  %v756 = vstv %s729
  %v757 = vmul.f32 %v748, %v756
  %v758 = vmul.f32 %v749, %v756
  %v759 = vmul.f32 %v750, %v756
  %v760 = vmul.f32 %v751, %v756
  %v761 = vmul.f32 %v752, %v756
  %v762 = vmul.f32 %v753, %v756
  %v763 = vmul.f32 %v754, %v756
  %v764 = vmul.f32 %v755, %v756
  %v765 = vadd.f32 %v581, %v757
  %v766 = vadd.f32 %v582, %v758
  %v767 = vadd.f32 %v583, %v759
  %v768 = vadd.f32 %v584, %v760
  %v769 = vadd.f32 %v585, %v761
  %v770 = vadd.f32 %v586, %v762
  %v771 = vadd.f32 %v587, %v763
  %v772 = vadd.f32 %v588, %v764
  %s773 = sld [smem:[#allocation3 + $0x11]]
  %s774 = sld [smem:[#allocation3 + $0x91]]
  %s775 = sld [smem:[#allocation3 + $0x111]]
  %v776 = vstv %s773
  %v777 = vmul.f32 %v15, %v776
  %v778 = vmul.f32 %v16, %v776
  %v779 = vmul.f32 %v17, %v776
  %v780 = vmul.f32 %v18, %v776
  %v781 = vmul.f32 %v19, %v776
  %v782 = vmul.f32 %v20, %v776
  %v783 = vmul.f32 %v21, %v776
  %v784 = vmul.f32 %v22, %v776
  %v785 = vstv %s774
  %v786 = vadd.f32 %v777, %v785
  %v787 = vadd.f32 %v778, %v785
  %v788 = vadd.f32 %v779, %v785
  %v789 = vadd.f32 %v780, %v785
  %v790 = vadd.f32 %v781, %v785
  %v791 = vadd.f32 %v782, %v785
  %v792 = vadd.f32 %v783, %v785
  %v793 = vadd.f32 %v784, %v785
  %v794 = vmax.f32 %v786, 0.0
  %v795 = vmax.f32 %v787, 0.0
  %v796 = vmax.f32 %v788, 0.0
  %v797 = vmax.f32 %v789, 0.0
  %v798 = vmax.f32 %v790, 0.0
  %v799 = vmax.f32 %v791, 0.0
  %v800 = vmax.f32 %v792, 0.0
  %v801 = vmax.f32 %v793, 0.0
  %v802 = vstv %s775
  %v803 = vmul.f32 %v794, %v802
  %v804 = vmul.f32 %v795, %v802
  %v805 = vmul.f32 %v796, %v802
  %v806 = vmul.f32 %v797, %v802
  %v807 = vmul.f32 %v798, %v802
  %v808 = vmul.f32 %v799, %v802
  %v809 = vmul.f32 %v800, %v802
  %v810 = vmul.f32 %v801, %v802
  %v811 = vadd.f32 %v627, %v803
  %v812 = vadd.f32 %v628, %v804
  %v813 = vadd.f32 %v629, %v805
  %v814 = vadd.f32 %v630, %v806
  %v815 = vadd.f32 %v631, %v807
  %v816 = vadd.f32 %v632, %v808
  %v817 = vadd.f32 %v633, %v809
  %v818 = vadd.f32 %v634, %v810
  %s819 = sld [smem:[#allocation3 + $0x12]]
  %s820 = sld [smem:[#allocation3 + $0x92]]
  %s821 = sld [smem:[#allocation3 + $0x112]]
  %v822 = vstv %s819
  %v823 = vmul.f32 %v15, %v822
  %v824 = vmul.f32 %v16, %v822
  %v825 = vmul.f32 %v17, %v822
  %v826 = vmul.f32 %v18, %v822
  %v827 = vmul.f32 %v19, %v822
  %v828 = vmul.f32 %v20, %v822
  %v829 = vmul.f32 %v21, %v822
  %v830 = vmul.f32 %v22, %v822
  %v831 = vstv %s820
  %v832 = vadd.f32 %v823, %v831
  %v833 = vadd.f32 %v824, %v831
  %v834 = vadd.f32 %v825, %v831
  %v835 = vadd.f32 %v826, %v831
  %v836 = vadd.f32 %v827, %v831
  %v837 = vadd.f32 %v828, %v831
  %v838 = vadd.f32 %v829, %v831
  %v839 = vadd.f32 %v830, %v831
  %v840 = vmax.f32 %v832, 0.0
  %v841 = vmax.f32 %v833, 0.0
  %v842 = vmax.f32 %v834, 0.0
  %v843 = vmax.f32 %v835, 0.0
  %v844 = vmax.f32 %v836, 0.0
  %v845 = vmax.f32 %v837, 0.0
  %v846 = vmax.f32 %v838, 0.0
  %v847 = vmax.f32 %v839, 0.0
  %v848 = vstv %s821
  %v849 = vmul.f32 %v840, %v848
  %v850 = vmul.f32 %v841, %v848
  %v851 = vmul.f32 %v842, %v848
  %v852 = vmul.f32 %v843, %v848
  %v853 = vmul.f32 %v844, %v848
  %v854 = vmul.f32 %v845, %v848
  %v855 = vmul.f32 %v846, %v848
  %v856 = vmul.f32 %v847, %v848
  %v857 = vadd.f32 %v673, %v849
  %v858 = vadd.f32 %v674, %v850
  %v859 = vadd.f32 %v675, %v851
  %v860 = vadd.f32 %v676, %v852
  %v861 = vadd.f32 %v677, %v853
  %v862 = vadd.f32 %v678, %v854
  %v863 = vadd.f32 %v679, %v855
  %v864 = vadd.f32 %v680, %v856
  %s865 = sld [smem:[#allocation3 + $0x13]]
  %s866 = sld [smem:[#allocation3 + $0x93]]
  %s867 = sld [smem:[#allocation3 + $0x113]]
  %v868 = vstv %s865
  %v869 = vmul.f32 %v15, %v868
  %v870 = vmul.f32 %v16, %v868
  %v871 = vmul.f32 %v17, %v868
  %v872 = vmul.f32 %v18, %v868
  %v873 = vmul.f32 %v19, %v868
  %v874 = vmul.f32 %v20, %v868
  %v875 = vmul.f32 %v21, %v868
  %v876 = vmul.f32 %v22, %v868
  %v877 = vstv %s866
  %v878 = vadd.f32 %v869, %v877
  %v879 = vadd.f32 %v870, %v877
  %v880 = vadd.f32 %v871, %v877
  %v881 = vadd.f32 %v872, %v877
  %v882 = vadd.f32 %v873, %v877
  %v883 = vadd.f32 %v874, %v877
  %v884 = vadd.f32 %v875, %v877
  %v885 = vadd.f32 %v876, %v877
  %v886 = vmax.f32 %v878, 0.0
  %v887 = vmax.f32 %v879, 0.0
  %v888 = vmax.f32 %v880, 0.0
  %v889 = vmax.f32 %v881, 0.0
  %v890 = vmax.f32 %v882, 0.0
  %v891 = vmax.f32 %v883, 0.0
  %v892 = vmax.f32 %v884, 0.0
  %v893 = vmax.f32 %v885, 0.0
  %v894 = vstv %s867
  %v895 = vmul.f32 %v886, %v894
  %v896 = vmul.f32 %v887, %v894
  %v897 = vmul.f32 %v888, %v894
  %v898 = vmul.f32 %v889, %v894
  %v899 = vmul.f32 %v890, %v894
  %v900 = vmul.f32 %v891, %v894
  %v901 = vmul.f32 %v892, %v894
  %v902 = vmul.f32 %v893, %v894
  %v903 = vadd.f32 %v719, %v895
  %v904 = vadd.f32 %v720, %v896
  %v905 = vadd.f32 %v721, %v897
  %v906 = vadd.f32 %v722, %v898
  %v907 = vadd.f32 %v723, %v899
  %v908 = vadd.f32 %v724, %v900
  %v909 = vadd.f32 %v725, %v901
  %v910 = vadd.f32 %v726, %v902
  %v911 = vadd.f32 %v765, %v811
  %v912 = vadd.f32 %v766, %v812
  %v913 = vadd.f32 %v767, %v813
  %v914 = vadd.f32 %v768, %v814
  %v915 = vadd.f32 %v769, %v815
  %v916 = vadd.f32 %v770, %v816
  %v917 = vadd.f32 %v771, %v817
  %v918 = vadd.f32 %v772, %v818
  %v919 = vadd.f32 %v857, %v903
  %v920 = vadd.f32 %v858, %v904
  %v921 = vadd.f32 %v859, %v905
  %v922 = vadd.f32 %v860, %v906
  %v923 = vadd.f32 %v861, %v907
  %v924 = vadd.f32 %v862, %v908
  %v925 = vadd.f32 %v863, %v909
  %v926 = vadd.f32 %v864, %v910
  %v927 = vadd.f32 %v911, %v919
  %v928 = vadd.f32 %v912, %v920
  %v929 = vadd.f32 %v913, %v921
  %v930 = vadd.f32 %v914, %v922
  %v931 = vadd.f32 %v915, %v923
  %v932 = vadd.f32 %v916, %v924
  %v933 = vadd.f32 %v917, %v925
  %v934 = vadd.f32 %v918, %v926
  %s935 = sld [smem:[#allocation3 + $0x180]]
  %v936 = vstv %s935
  %v937 = vadd.f32 %v927, %v936
  %v938 = vadd.f32 %v928, %v936
  %v939 = vadd.f32 %v929, %v936
  %v940 = vadd.f32 %v930, %v936
  %v941 = vadd.f32 %v931, %v936
  %v942 = vadd.f32 %v932, %v936
  %v943 = vadd.f32 %v933, %v936
  %v944 = vadd.f32 %v934, %v936
  %945 = vst [vmem:[%s2] sm:$0xff] %v937
  %946 = vst [vmem:[%s2 + $0x8] sm:$0xff] %v938
  %947 = vst [vmem:[%s2 + $0x10] sm:$0xff] %v939
  %948 = vst [vmem:[%s2 + $0x18] sm:$0xff] %v940
  %949 = vst [vmem:[%s2 + $0x20] sm:$0xff] %v941
  %950 = vst [vmem:[%s2 + $0x28] sm:$0xff] %v942
  %951 = vst [vmem:[%s2 + $0x30] sm:$0xff] %v943
  %952 = vst [vmem:[%s2 + $0x38] sm:$0xff] %v944
  // Predicated region
  $region6: #{net_forward.1} parent=0 // pred_check
    _
  $region7: #{net_forward.1} parent=0 // pred_check_branch
    %954 = sbr.rel (0) target = $region9
  $region8: #{net_forward.1} parent=0 // pred_region
    _
  $region9: #{net_forward.1} parent=0 // pred_fallthru
    _
  // Predicated region
  $region10: #{net_forward.1} parent=0 // pred_check
    _
  $region11: #{net_forward.1} parent=0 // pred_check_branch
    %956 = sbr.rel (0) target = $region13
  $region12: #{net_forward.1} parent=0 // pred_region
    _
  $region13: #{net_forward.1} parent=0 // pred_fallthru
    _

</llo_original>
